<compile_context>
chip_gen: v6e
topology: v6e:2x2x1
jax: 0.10.0
libtpu: 0.0.40
codegen_flags: <defaults>
</compile_context>

<pallas_src>
import jax
import jax.numpy as jnp
from jax import lax
from jax.experimental import pallas as pl
from jax.experimental.pallas import tpu as pltpu

K = 3        # ConvTranspose2d kernel size
PAD = 1      # ConvTranspose2d padding
LANE = 128   # TPU lane width
SUB = 8      # TPU sublane width


def _round_up(x, m):
    return (x + m - 1) // m * m


def _convt_kernel(x_ref, hup_ref, hdn_ref, band_ref, b_ref, o_ref):
    """One row block of the stride-1 transposed conv.

    x_ref   : (BH, Wp)   current row block of the lane-dense input slab
    hup_ref : (1, 1, Wp) row just above this block (zeros for the first block)
    hdn_ref : (1, 1, Wp) row just below this block (zeros for the last block)
    band_ref: (3, Wp, Wp) banded column-tap matrices (kernel flip folded in)
    b_ref   : (1,) SMEM  bias
    o_ref   : (BH, Wp)   output row block (lane-dense store)
    """
    bh, wp = o_ref.shape
    x = x_ref[...]

    # Row taps: "row above" / "row below" built with banded shift matmuls so no
    # unaligned sublane slices or halo pad are needed; the boundary row comes
    # from the tiny halo inputs.
    ri = lax.broadcasted_iota(jnp.int32, (bh, bh), 0)
    ci = lax.broadcasted_iota(jnp.int32, (bh, bh), 1)
    s_up = (ci == ri - 1).astype(jnp.float32)   # (s_up @ x)[i] = x[i-1]
    s_dn = (ci == ri + 1).astype(jnp.float32)   # (s_dn @ x)[i] = x[i+1]

    up = jnp.dot(s_up, x, preferred_element_type=jnp.float32)
    dn = jnp.dot(s_dn, x, preferred_element_type=jnp.float32)

    rowid = lax.broadcasted_iota(jnp.int32, (bh, wp), 0)
    up = up + jnp.where(rowid == 0,
                        jnp.broadcast_to(hup_ref[0], (bh, wp)), 0.0)
    dn = dn + jnp.where(rowid == bh - 1,
                        jnp.broadcast_to(hdn_ref[0], (bh, wp)), 0.0)

    # Column taps: one banded (Wp, Wp) matmul per vertical tap.  The band matrix
    # encodes the (already flipped) 3 horizontal taps and implicitly provides
    # the zero halo at the lane edges -- no lane-offset slices, no masked loads.
    acc = jnp.dot(up, band_ref[0], preferred_element_type=jnp.float32)
    acc = acc + jnp.dot(x, band_ref[1], preferred_element_type=jnp.float32)
    acc = acc + jnp.dot(dn, band_ref[2], preferred_element_type=jnp.float32)

    o_ref[...] = acc + b_ref[0]


def conv_transpose2d_1to1_k3_p1(x_nchw, weight, bias, *, row_block=256):
    """Forward of nn.ConvTranspose2d(1, 1, 3, padding=1) via a Pallas TPU kernel.

    x_nchw: (1, 1, H, W); weight: (1, 1, 3, 3) (PyTorch layout); bias: (1,).
    Returns (1, 1, H, W) float32.
    """
    assert x_nchw.shape[0] == 1 and x_nchw.shape[1] == 1, "module is 1->1 channels"
    assert weight.shape == (1, 1, K, K) and bias.shape == (1,)
    H, W = int(x_nchw.shape[2]), int(x_nchw.shape[3])

    x2d = x_nchw[0, 0].astype(jnp.float32)

    # Lane-dense slab: W -> multiple of 128 (lanes), H -> multiple of the row
    # block.  The zero padding (needed for layout anyway) doubles as the
    # right/bottom halo; no separate (H+2, W+2) halo pad.
    BH = min(row_block, _round_up(H, SUB))
    Wp = _round_up(W, LANE)
    Hp = _round_up(H, BH)
    nb = Hp // BH

    slab = jnp.pad(x2d, ((0, Hp - H), (0, Wp - W)))

    # Per-block halo rows (nb, 1, Wp): row above / row below each row block.
    zero_row = jnp.zeros((1, Wp), jnp.float32)
    blk_last = slab[BH - 1::BH]      # last row of each block   (nb, Wp)
    blk_first = slab[0::BH]          # first row of each block  (nb, Wp)
    halo_up = jnp.concatenate([zero_row, blk_last[:-1]], axis=0)[:, None, :]
    halo_dn = jnp.concatenate([blk_first[1:], zero_row], axis=0)[:, None, :]

    # Banded column-tap matrices (3, Wp, Wp).  wf[a, b] = w[2-a, 2-b]; the flip
    # is pure static indexing (no reverse op).  B_a[j-1, j] = wf[a, 0],
    # B_a[j, j] = wf[a, 1], B_a[j+1, j] = wf[a, 2].
    w2 = weight[0, 0].astype(jnp.float32)
    diag = jnp.eye(Wp, dtype=jnp.float32)
    low = jnp.eye(Wp, k=1, dtype=jnp.float32)    # input col j-1 -> output col j
    upp = jnp.eye(Wp, k=-1, dtype=jnp.float32)   # input col j+1 -> output col j
    band = jnp.stack(
        [w2[2 - a, 2] * low + w2[2 - a, 1] * diag + w2[2 - a, 0] * upp
         for a in range(K)])

    # Explicit scoped-VMEM budget (v5e default is only 16 MiB), capped so it is
    # also legal on v7x's 64 MiB VMEM.
    blk_bytes = BH * Wp * 4
    band_bytes = K * Wp * Wp * 4
    vmem_need = 8 * blk_bytes + 2 * band_bytes + (2 << 20)
    vmem_limit = min(max(vmem_need, 16 * 1024 * 1024), 48 * 1024 * 1024)

    out_slab = pl.pallas_call(
        _convt_kernel,
        out_shape=jax.ShapeDtypeStruct((Hp, Wp), jnp.float32),
        grid=(nb,),
        in_specs=[
            pl.BlockSpec((BH, Wp), lambda i: (i, 0)),
            pl.BlockSpec((1, 1, Wp), lambda i: (i, 0, 0)),
            pl.BlockSpec((1, 1, Wp), lambda i: (i, 0, 0)),
            pl.BlockSpec((K, Wp, Wp), lambda i: (0, 0, 0)),
            pl.BlockSpec((1,), lambda i: (0,), memory_space=pltpu.SMEM),
        ],
        out_specs=pl.BlockSpec((BH, Wp), lambda i: (i, 0)),
        compiler_params=pltpu.CompilerParams(
            dimension_semantics=("parallel",),
            vmem_limit_bytes=vmem_limit,
        ),
    )(slab, halo_up, halo_dn, band, bias.astype(jnp.float32))

    return out_slab[:H, :W][None, None, :, :]


def _reference_conv_transpose2d(x, w, b):
    """Direct scatter definition of ConvTranspose2d (stride=1, padding=PAD)."""
    N, Cin, H, W = x.shape
    _, Cout, KH, KW = w.shape
    full = jnp.zeros((N, Cout, H + KH - 1, W + KW - 1), jnp.float32)
    for a in range(KH):
        for bb in range(KW):
            full = full.at[:, :, a:a + H, bb:bb + W].add(
                jnp.einsum("nihw,io->nohw", x, w[:, :, a, bb]))
    out = full[:, :, PAD:PAD + H, PAD:PAD + W]
    return out + b.reshape(1, Cout, 1, 1)


if __name__ == "__main__":
    key = jax.random.PRNGKey(0)
    kx, kw, kb = jax.random.split(key, 3)

    # Input consistent with the module: x1 = torch.randn(1, 1, 5, 5)
    x1 = jax.random.normal(kx, (1, 1, 5, 5), dtype=jnp.float32)

    # Deterministic ConvTranspose2d(1, 1, 3) parameters
    # (PyTorch layout: weight (in_ch, out_ch, kH, kW) = (1, 1, 3, 3), bias (1,))
    fan_in = 1 * K * K
    bound = 1.0 / (fan_in ** 0.5)
    weight = jax.random.uniform(kw, (1, 1, K, K), jnp.float32, -bound, bound)
    bias = jax.random.uniform(kb, (1,), jnp.float32, -bound, bound)

    out = conv_transpose2d_1to1_k3_p1(x1, weight, bias)
    out = jax.block_until_ready(out)
    assert out.shape == (1, 1, 5, 5)

    ref = _reference_conv_transpose2d(x1, weight, bias)
    max_err = float(jnp.max(jnp.abs(out - ref)))
    assert max_err < 1e-4, f"max abs error {max_err}"

    print("KERNEL_OK")
</pallas_src>

<mosaic_0001>
module attributes {stable_mosaic.version = 11 : i64} {
  func.func @_convt_kernel(%arg0: i32, %arg1: memref<8x128xf32, #tpu.memory_space<vmem>>, %arg2: memref<1x1x128xf32, #tpu.memory_space<vmem>>, %arg3: memref<1x1x128xf32, #tpu.memory_space<vmem>>, %arg4: memref<3x128x128xf32, #tpu.memory_space<vmem>>, %arg5: memref<1xf32, #tpu.memory_space<smem>>, %arg6: memref<8x128xf32, #tpu.memory_space<vmem>>) attributes {dimension_semantics = [#tpu.dimension_semantics<parallel>], iteration_bounds = array<i64: 1>, scalar_prefetch = 0 : i64, scratch_operands = 0 : i64, tpu.core_type = #tpu.core_type<tc>, window_params = [{transform_indices = @transform_0, window_bounds = array<i64: 8, 128>}, {transform_indices = @transform_1, window_bounds = array<i64: 1, 1, 128>}, {transform_indices = @transform_2, window_bounds = array<i64: 1, 1, 128>}, {pipeline_mode = #tpu.pipeline_mode<synchronous>, transform_indices = @transform_3, window_bounds = array<i64: 3, 128, 128>}, {transform_indices = @transform_4, window_bounds = array<i64: 1>}, {transform_indices = @transform_5, window_bounds = array<i64: 8, 128>}]} {
    %c0 = arith.constant 0 : index
    %c0_0 = arith.constant 0 : index
    %0 = vector.load %arg1[%c0, %c0_0] : memref<8x128xf32, #tpu.memory_space<vmem>>, vector<8x128xf32>
    %1 = tpu.iota {dimensions = array<i32: 0>} : vector<8x8xi32>
    %2 = tpu.iota {dimensions = array<i32: 1>} : vector<8x8xi32>
    %c1_i32 = arith.constant 1 : i32
    %3 = vector.broadcast %c1_i32 : i32 to vector<8x8xi32>
    %4 = arith.subi %1, %3 : vector<8x8xi32>
    %5 = arith.cmpi eq, %2, %4 : vector<8x8xi32>
    %6 = arith.extui %5 : vector<8x8xi1> to vector<8x8xi32>
    %7 = arith.sitofp %6 : vector<8x8xi32> to vector<8x8xf32>
    %c1_i32_1 = arith.constant 1 : i32
    %8 = vector.broadcast %c1_i32_1 : i32 to vector<8x8xi32>
    %9 = arith.addi %1, %8 : vector<8x8xi32>
    %10 = arith.cmpi eq, %2, %9 : vector<8x8xi32>
    %11 = arith.extui %10 : vector<8x8xi1> to vector<8x8xi32>
    %12 = arith.sitofp %11 : vector<8x8xi32> to vector<8x8xf32>
    %cst = arith.constant dense<0.000000e+00> : vector<8x128xf32>
    %13 = tpu.matmul %7, %0, %cst {dimension_numbers = #tpu.dot_dimension_numbers<[1], [0], [0], [1], [0, 0, 1, 1], [], []>} : vector<8x8xf32>, vector<8x128xf32>, vector<8x128xf32> -> vector<8x128xf32>
    %cst_2 = arith.constant dense<0.000000e+00> : vector<8x128xf32>
    %14 = tpu.matmul %12, %0, %cst_2 {dimension_numbers = #tpu.dot_dimension_numbers<[1], [0], [0], [1], [0, 0, 1, 1], [], []>} : vector<8x8xf32>, vector<8x128xf32>, vector<8x128xf32> -> vector<8x128xf32>
    %15 = tpu.iota {dimensions = array<i32: 0>} : vector<8x128xi32>
    %c0_i32 = arith.constant 0 : i32
    %16 = vector.broadcast %c0_i32 : i32 to vector<8x128xi32>
    %17 = arith.cmpi eq, %15, %16 : vector<8x128xi32>
    %c0_3 = arith.constant 0 : index
    %c0_4 = arith.constant 0 : index
    %c0_5 = arith.constant 0 : index
    %18 = vector.load %arg2[%c0_3, %c0_4, %c0_5] : memref<1x1x128xf32, #tpu.memory_space<vmem>>, vector<1x1x128xf32>
    %19 = vector.shape_cast %18 : vector<1x1x128xf32> to vector<1x128xf32>
    %20 = vector.shape_cast %19 : vector<1x128xf32> to vector<1x128xf32>
    %21 = vector.broadcast %20 : vector<1x128xf32> to vector<8x128xf32>
    %cst_6 = arith.constant 0.000000e+00 : f32
    %22 = vector.broadcast %cst_6 : f32 to vector<8x128xf32>
    %23 = arith.select %17, %21, %22 : vector<8x128xi1>, vector<8x128xf32>
    %24 = arith.addf %13, %23 : vector<8x128xf32>
    %c7_i32 = arith.constant 7 : i32
    %25 = vector.broadcast %c7_i32 : i32 to vector<8x128xi32>
    %26 = arith.cmpi eq, %15, %25 : vector<8x128xi32>
    %c0_7 = arith.constant 0 : index
    %c0_8 = arith.constant 0 : index
    %c0_9 = arith.constant 0 : index
    %27 = vector.load %arg3[%c0_7, %c0_8, %c0_9] : memref<1x1x128xf32, #tpu.memory_space<vmem>>, vector<1x1x128xf32>
    %28 = vector.shape_cast %27 : vector<1x1x128xf32> to vector<1x128xf32>
    %29 = vector.shape_cast %28 : vector<1x128xf32> to vector<1x128xf32>
    %30 = vector.broadcast %29 : vector<1x128xf32> to vector<8x128xf32>
    %cst_10 = arith.constant 0.000000e+00 : f32
    %31 = vector.broadcast %cst_10 : f32 to vector<8x128xf32>
    %32 = arith.select %26, %30, %31 : vector<8x128xi1>, vector<8x128xf32>
    %33 = arith.addf %14, %32 : vector<8x128xf32>
    %c0_11 = arith.constant 0 : index
    %c0_12 = arith.constant 0 : index
    %c0_13 = arith.constant 0 : index
    %34 = vector.load %arg4[%c0_11, %c0_12, %c0_13] : memref<3x128x128xf32, #tpu.memory_space<vmem>>, vector<1x128x128xf32>
    %35 = vector.shape_cast %34 : vector<1x128x128xf32> to vector<128x128xf32>
    %cst_14 = arith.constant dense<0.000000e+00> : vector<8x128xf32>
    %36 = tpu.matmul %24, %35, %cst_14 {dimension_numbers = #tpu.dot_dimension_numbers<[1], [0], [0], [1], [0, 0, 1, 1], [], []>} : vector<8x128xf32>, vector<128x128xf32>, vector<8x128xf32> -> vector<8x128xf32>
    %c1 = arith.constant 1 : index
    %c0_15 = arith.constant 0 : index
    %c0_16 = arith.constant 0 : index
    %37 = vector.load %arg4[%c1, %c0_15, %c0_16] : memref<3x128x128xf32, #tpu.memory_space<vmem>>, vector<1x128x128xf32>
    %38 = vector.shape_cast %37 : vector<1x128x128xf32> to vector<128x128xf32>
    %cst_17 = arith.constant dense<0.000000e+00> : vector<8x128xf32>
    %39 = tpu.matmul %0, %38, %cst_17 {dimension_numbers = #tpu.dot_dimension_numbers<[1], [0], [0], [1], [0, 0, 1, 1], [], []>} : vector<8x128xf32>, vector<128x128xf32>, vector<8x128xf32> -> vector<8x128xf32>
    %40 = arith.addf %36, %39 : vector<8x128xf32>
    %c2 = arith.constant 2 : index
    %c0_18 = arith.constant 0 : index
    %c0_19 = arith.constant 0 : index
    %41 = vector.load %arg4[%c2, %c0_18, %c0_19] : memref<3x128x128xf32, #tpu.memory_space<vmem>>, vector<1x128x128xf32>
    %42 = vector.shape_cast %41 : vector<1x128x128xf32> to vector<128x128xf32>
    %cst_20 = arith.constant dense<0.000000e+00> : vector<8x128xf32>
    %43 = tpu.matmul %33, %42, %cst_20 {dimension_numbers = #tpu.dot_dimension_numbers<[1], [0], [0], [1], [0, 0, 1, 1], [], []>} : vector<8x128xf32>, vector<128x128xf32>, vector<8x128xf32> -> vector<8x128xf32>
    %44 = arith.addf %40, %43 : vector<8x128xf32>
    %c0_21 = arith.constant 0 : index
    %45 = memref.load %arg5[%c0_21] : memref<1xf32, #tpu.memory_space<smem>>
    %46 = vector.broadcast %45 : f32 to vector<8x128xf32>
    %47 = arith.addf %44, %46 : vector<8x128xf32>
    %c0_22 = arith.constant 0 : index
    %c0_23 = arith.constant 0 : index
    %48 = vector.load %arg6[%c0_22, %c0_23] : memref<8x128xf32, #tpu.memory_space<vmem>>, vector<8x128xf32>
    tpu.vector_store %arg6[%c0_22, %c0_23], %47 {strides = array<i32>} : memref<8x128xf32, #tpu.memory_space<vmem>>, vector<8x128xf32>,
    return
  }
  func.func @transform_0(%arg0: i32) -> (i32, i32) {
    %c0_i32 = arith.constant 0 : i32
    %c0_i32_0 = arith.constant 0 : i32
    return %arg0, %c0_i32 : i32, i32
  }
  func.func @transform_1(%arg0: i32) -> (i32, i32, i32) {
    %c0_i32 = arith.constant 0 : i32
    %c0_i32_0 = arith.constant 0 : i32
    %c0_i32_1 = arith.constant 0 : i32
    return %arg0, %c0_i32, %c0_i32_0 : i32, i32, i32
  }
  func.func @transform_2(%arg0: i32) -> (i32, i32, i32) {
    %c0_i32 = arith.constant 0 : i32
    %c0_i32_0 = arith.constant 0 : i32
    %c0_i32_1 = arith.constant 0 : i32
    return %arg0, %c0_i32, %c0_i32_0 : i32, i32, i32
  }
  func.func @transform_3(%arg0: i32) -> (i32, i32, i32) {
    %c0_i32 = arith.constant 0 : i32
    %c0_i32_0 = arith.constant 0 : i32
    %c0_i32_1 = arith.constant 0 : i32
    %c0_i32_2 = arith.constant 0 : i32
    return %c0_i32, %c0_i32_0, %c0_i32_1 : i32, i32, i32
  }
  func.func @transform_4(%arg0: i32) -> i32 {
    %c0_i32 = arith.constant 0 : i32
    %c0_i32_0 = arith.constant 0 : i32
    return %c0_i32 : i32
  }
  func.func @transform_5(%arg0: i32) -> (i32, i32) {
    %c0_i32 = arith.constant 0 : i32
    %c0_i32_0 = arith.constant 0 : i32
    return %arg0, %c0_i32 : i32, i32
  }
}

</mosaic_0001>

<llo_original>
// kernel: tpu_custom_call.1
$region0: #{tpu_custom_call.1}
  #allocation0 [shape = 'u32[]', space=smem, size = 0x4, offset = 0x4, fixed_abs, tag = 'smem constant byte address 0x4 - core index']
  #allocation1 [shape = 'u32[144,128]{1,0:T(1,128)}', space=vmem, size = 0x12000, scoped, tag = 'internal scratch']
  #allocation2 [shape = 'f32[1]{0:T(128)S(6)}', space=smem, size = 0x200, scoped, tag = 'scoped memory for tpu_custom_call.1']
  %s0 = inlined_call_operand.hbm [shape: f32[8,128], index: 0, kind: input, shape index: {}]
  %s1 = inlined_call_operand.vmem [shape: f32[1,1,128], index: 1, kind: input, shape index: {}]
  %s2 = inlined_call_operand.vmem [shape: f32[1,1,128], index: 2, kind: input, shape index: {}]
  %s3 = inlined_call_operand.hbm [shape: f32[3,128,128], index: 3, kind: input, shape index: {}]
  %s4 = inlined_call_operand.<no memory space> [shape: f32[1], index: 4, kind: input, shape index: {}]
  %s5 = inlined_call_operand.hbm [shape: f32[8,128], index: 5, kind: output, shape index: {}]
  %s6 = sld [smem:[#allocation0]]
  $region38: #{tpu_custom_call.1} parent=0
    _
  %s8 = ssub.s32 1, %s6
  %s9 = scalar_select 0, %s8, %s6
  %10 = sst [smem:[#allocation2]] %s4
  $region1: #{tpu_custom_call.1} parent=0
    #allocation3 [shape = 'u8[4096]{0}', space=vmem, size = 0x1000, scoped, tag = 'input window, operand 0, single buffered']
    #allocation4 [shape = 's32[1]{0}', space=sflag, size = 0x4, scoped, tag = 'scoped memory for tpu_custom_call.1']
    #allocation5 [shape = 's32[1]{0}', space=sflag, size = 0x4, scoped, tag = 'scoped memory for tpu_custom_call.1']
    #allocation6 [shape = 'u8[196608]{0}', space=vmem, size = 0x30000, scoped, tag = 'input window, operand 3, single buffered']
    #allocation7 [shape = 's32[1]{0}', space=sflag, size = 0x4, scoped, tag = 'scoped memory for tpu_custom_call.1']
    #allocation8 [shape = 'u8[4096]{0}', space=vmem, size = 0x1000, scoped, tag = 'output window, operand 0, single buffered']
    %11 = vsyncpa [#allocation4], 0
    %12 = vsyncpa [#allocation7], 0
    %13 = vsyncpa [#allocation5], 0
    // Predicated region
    $region2: #{tpu_custom_call.1} parent=1 // pred_check
      _
    $region3: #{tpu_custom_call.1} parent=1 // pred_check_branch
      %15 = sbr.rel (0) target = $region5
    $region4: #{tpu_custom_call.1} parent=1 // pred_region
      %s17 = ssub.s32 128, 128
      %18 = vsyncadd [#allocation4], %s17
      %s20 = sshll.u32 [#allocation3], 4
      %s21 = int_to_ptr.vmem [resolvable:$true] %s20
      %23 = dma.hbm_to_vmem [thread:$0]  %s0, 128, %s21, [#allocation4]
    $region5: #{tpu_custom_call.1} parent=1 // pred_fallthru
      _
    // Predicated region
    $region6: #{tpu_custom_call.1} parent=1 // pred_check
      _
    $region7: #{tpu_custom_call.1} parent=1 // pred_check_branch
      %25 = sbr.rel (0) target = $region9
    $region8: #{tpu_custom_call.1} parent=1 // pred_region
      _
    $region9: #{tpu_custom_call.1} parent=1 // pred_fallthru
      _
    // Predicated region
    $region10: #{tpu_custom_call.1} parent=1 // pred_check
      _
    $region11: #{tpu_custom_call.1} parent=1 // pred_check_branch
      %27 = sbr.rel (0) target = $region13
    $region12: #{tpu_custom_call.1} parent=1 // pred_region
      _
    $region13: #{tpu_custom_call.1} parent=1 // pred_fallthru
      _
    // Predicated region
    $region14: #{tpu_custom_call.1} parent=1 // pred_check
      _
    $region15: #{tpu_custom_call.1} parent=1 // pred_check_branch
      %29 = sbr.rel (0) target = $region17
    $region16: #{tpu_custom_call.1} parent=1 // pred_region
      %s31 = ssub.s32 6144, 6144
      %32 = vsyncadd [#allocation7], %s31
      %s33 = sshll.u32 [#allocation6], 4
      %s34 = int_to_ptr.vmem [resolvable:$true] %s33
      %39 = dma.hbm_to_vmem [thread:$0]  %s3, 6144, %s34, [#allocation7], 128, 128, 8
    $region17: #{tpu_custom_call.1} parent=1 // pred_fallthru
      _
    // Predicated region
    $region18: #{tpu_custom_call.1} parent=1 // pred_check
      _
    $region19: #{tpu_custom_call.1} parent=1 // pred_check_branch
      %41 = sbr.rel (0) target = $region21
    $region20: #{tpu_custom_call.1} parent=1 // pred_region
      _
    $region21: #{tpu_custom_call.1} parent=1 // pred_fallthru
      _
    // Predicated region
    $region22: #{tpu_custom_call.1} parent=1 // pred_check
      _
    $region23: #{tpu_custom_call.1} parent=1 // pred_check_branch
      %43 = sbr.rel (0) target = $region25
    $region24: #{tpu_custom_call.1} parent=1 // pred_region
      %44 = dma.done [#allocation4], 128
    $region25: #{tpu_custom_call.1} parent=1 // pred_fallthru
      _
    // Predicated region
    $region26: #{tpu_custom_call.1} parent=1 // pred_check
      _
    $region27: #{tpu_custom_call.1} parent=1 // pred_check_branch
      %46 = sbr.rel (0) target = $region29
    $region28: #{tpu_custom_call.1} parent=1 // pred_region
      %47 = dma.done [#allocation7], 6144
    $region29: #{tpu_custom_call.1} parent=1 // pred_fallthru
      _
    %v48 = vld [vmem:[#allocation3] sm:$0xff]
    %v49 = vlaneseq
    %v50 = vshrl.u32 %v49, 7
    %v51 = vlaneseq
    %v52 = vand.u32 %v51, 127
    %v53 = vsub.s32 %v50, 1
    %vm54 = vcmp.eq.s32.totalorder %v52, %v53
    %v55 = vsel %vm54, 1, 0
    %v56 = vcvt.s32.f32 %v55
    %v57 = vadd.s32 %v50, 1
    %vm58 = vcmp.eq.s32.totalorder %v52, %v57
    %v59 = vsel %vm58, 1, 0
    %v60 = vcvt.s32.f32 %v59
    %vm61 = vcmp.eq.s32.totalorder %v50, 0
    %v62 = vld [vmem:[%s1] sm:$0x1]
    %v64 = vlaneseq
    %v65 = vshrl.u32 %v64, 7
    %v66 = vsub.s32 0, %v65
    %v67 = vrot.slane %v62, %v66
    %v69 = vsel %vm61, %v67, 0.0
    %vm70 = vcmask 64512
    %v72 = vsel %vm70, %v56, 0
    %74 = vmatprep.subr.mxu0 0.0
    %75 = vmatpush1.msra.mxu0 0.0
    %76 = vmatprep.subr.mxu0 0.0
    %77 = vmatpush1.msra.mxu0 0.0
    %78 = vmatprep.subr.mxu0 0.0
    %79 = vmatpush1.msra.mxu0 0.0
    %80 = vmatprep.subr.mxu0 0.0
    %81 = vmatpush1.msra.mxu0 0.0
    %82 = vmatprep.subr.mxu0 0.0
    %83 = vmatpush1.msra.mxu0 0.0
    %84 = vmatprep.subr.mxu0 0.0
    %85 = vmatpush1.msra.mxu0 0.0
    %86 = vmatprep.subr.mxu0 0.0
    %87 = vmatpush1.msra.mxu0 0.0
    %88 = vmatprep.subr.mxu0 0.0
    %89 = vmatpush1.msra.mxu0 0.0
    %90 = vmatprep.subr.mxu0 0.0
    %91 = vmatpush1.msra.mxu0 0.0
    %92 = vmatprep.subr.mxu0 0.0
    %93 = vmatpush1.msra.mxu0 0.0
    %94 = vmatprep.subr.mxu0 0.0
    %95 = vmatpush1.msra.mxu0 0.0
    %96 = vmatprep.subr.mxu0 0.0
    %97 = vmatpush1.msra.mxu0 0.0
    %98 = vmatprep.subr.mxu0 0.0
    %99 = vmatpush1.msra.mxu0 0.0
    %100 = vmatprep.subr.mxu0 0.0
    %101 = vmatpush1.msra.mxu0 0.0
    %102 = vmatprep.subr.mxu0 0.0
    %103 = vmatpush1.msra.mxu0 0.0
    %104 = vmatprep.subr.mxu0 0.0
    %105 = vmatpush1.msra.mxu0 %v48
    %106 = vmatprep.subr.mxu0 0.0
    %107 = vmatpush2.msra.mxu0 0.0
    %108 = vmatprep.subr.mxu0 0.0
    %109 = vmatpush2.msra.mxu0 0.0
    %110 = vmatprep.subr.mxu0 0.0
    %111 = vmatpush2.msra.mxu0 0.0
    %112 = vmatprep.subr.mxu0 0.0
    %113 = vmatpush2.msra.mxu0 0.0
    %114 = vmatprep.subr.mxu0 0.0
    %115 = vmatpush2.msra.mxu0 0.0
    %116 = vmatprep.subr.mxu0 0.0
    %117 = vmatpush2.msra.mxu0 0.0
    %118 = vmatprep.subr.mxu0 0.0
    %119 = vmatpush2.msra.mxu0 0.0
    %120 = vmatprep.subr.mxu0 0.0
    %121 = vmatpush2.msra.mxu0 0.0
    %122 = vmatprep.subr.mxu0 0.0
    %123 = vmatpush2.msra.mxu0 0.0
    %124 = vmatprep.subr.mxu0 0.0
    %125 = vmatpush2.msra.mxu0 0.0
    %126 = vmatprep.subr.mxu0 0.0
    %127 = vmatpush2.msra.mxu0 0.0
    %128 = vmatprep.subr.mxu0 0.0
    %129 = vmatpush2.msra.mxu0 0.0
    %130 = vmatprep.subr.mxu0 0.0
    %131 = vmatpush2.msra.mxu0 0.0
    %132 = vmatprep.subr.mxu0 0.0
    %133 = vmatpush2.msra.mxu0 0.0
    %134 = vmatprep.subr.mxu0 0.0
    %135 = vmatpush2.msra.mxu0 0.0
    %136 = vmatprep.subr.mxu0 0.0
    %137 = vmatpush2.msra.mxu0 0.0
    %138 = vmatprep.mubr.f32.mxu0 0.0
    %139 = vmatmul.mubr.f32.gmra.mxu0 %v72
    %v140 = vpop.f32.mrf.mxu0
    %v141 = vadd.f32 %v69, %v140
    %v142 = vpop.f32.mrf.mxu0
    %143 = vdwg.mxu0
    %vm144 = vcmp.eq.s32.totalorder %v50, 7
    %v145 = vld [vmem:[%s2] sm:$0x1]
    %v147 = vlaneseq
    %v148 = vshrl.u32 %v147, 7
    %v149 = vsub.s32 0, %v148
    %v150 = vrot.slane %v145, %v149
    %v152 = vsel %vm144, %v150, 0.0
    %v154 = vsel %vm70, %v60, 0
    %156 = vmatprep.subr.mxu0 0.0
    %157 = vmatpush1.msra.mxu0 0.0
    %158 = vmatprep.subr.mxu0 0.0
    %159 = vmatpush1.msra.mxu0 0.0
    %160 = vmatprep.subr.mxu0 0.0
    %161 = vmatpush1.msra.mxu0 0.0
    %162 = vmatprep.subr.mxu0 0.0
    %163 = vmatpush1.msra.mxu0 0.0
    %164 = vmatprep.subr.mxu0 0.0
    %165 = vmatpush1.msra.mxu0 0.0
    %166 = vmatprep.subr.mxu0 0.0
    %167 = vmatpush1.msra.mxu0 0.0
    %168 = vmatprep.subr.mxu0 0.0
    %169 = vmatpush1.msra.mxu0 0.0
    %170 = vmatprep.subr.mxu0 0.0
    %171 = vmatpush1.msra.mxu0 0.0
    %172 = vmatprep.subr.mxu0 0.0
    %173 = vmatpush1.msra.mxu0 0.0
    %174 = vmatprep.subr.mxu0 0.0
    %175 = vmatpush1.msra.mxu0 0.0
    %176 = vmatprep.subr.mxu0 0.0
    %177 = vmatpush1.msra.mxu0 0.0
    %178 = vmatprep.subr.mxu0 0.0
    %179 = vmatpush1.msra.mxu0 0.0
    %180 = vmatprep.subr.mxu0 0.0
    %181 = vmatpush1.msra.mxu0 0.0
    %182 = vmatprep.subr.mxu0 0.0
    %183 = vmatpush1.msra.mxu0 0.0
    %184 = vmatprep.subr.mxu0 0.0
    %185 = vmatpush1.msra.mxu0 0.0
    %186 = vmatprep.subr.mxu0 0.0
    %187 = vmatpush1.msra.mxu0 %v48
    %188 = vmatprep.subr.mxu0 0.0
    %189 = vmatpush2.msra.mxu0 0.0
    %190 = vmatprep.subr.mxu0 0.0
    %191 = vmatpush2.msra.mxu0 0.0
    %192 = vmatprep.subr.mxu0 0.0
    %193 = vmatpush2.msra.mxu0 0.0
    %194 = vmatprep.subr.mxu0 0.0
    %195 = vmatpush2.msra.mxu0 0.0
    %196 = vmatprep.subr.mxu0 0.0
    %197 = vmatpush2.msra.mxu0 0.0
    %198 = vmatprep.subr.mxu0 0.0
    %199 = vmatpush2.msra.mxu0 0.0
    %200 = vmatprep.subr.mxu0 0.0
    %201 = vmatpush2.msra.mxu0 0.0
    %202 = vmatprep.subr.mxu0 0.0
    %203 = vmatpush2.msra.mxu0 0.0
    %204 = vmatprep.subr.mxu0 0.0
    %205 = vmatpush2.msra.mxu0 0.0
    %206 = vmatprep.subr.mxu0 0.0
    %207 = vmatpush2.msra.mxu0 0.0
    %208 = vmatprep.subr.mxu0 0.0
    %209 = vmatpush2.msra.mxu0 0.0
    %210 = vmatprep.subr.mxu0 0.0
    %211 = vmatpush2.msra.mxu0 0.0
    %212 = vmatprep.subr.mxu0 0.0
    %213 = vmatpush2.msra.mxu0 0.0
    %214 = vmatprep.subr.mxu0 0.0
    %215 = vmatpush2.msra.mxu0 0.0
    %216 = vmatprep.subr.mxu0 0.0
    %217 = vmatpush2.msra.mxu0 0.0
    %218 = vmatprep.subr.mxu0 0.0
    %219 = vmatpush2.msra.mxu0 0.0
    %220 = vmatprep.mubr.f32.mxu0 0.0
    %221 = vmatmul.mubr.f32.gmra.mxu0 %v154
    %v222 = vpop.f32.mrf.mxu0
    %v223 = vadd.f32 %v152, %v222
    %v224 = vpop.f32.mrf.mxu0
    %225 = vdwg.mxu0
    %v226 = vld [vmem:[#allocation6] sm:$0xff]
    %v227 = vld [vmem:[#allocation6 + $0x8] sm:$0xff]
    %v228 = vld [vmem:[#allocation6 + $0x10] sm:$0xff]
    %v229 = vld [vmem:[#allocation6 + $0x18] sm:$0xff]
    %v230 = vld [vmem:[#allocation6 + $0x20] sm:$0xff]
    %v231 = vld [vmem:[#allocation6 + $0x28] sm:$0xff]
    %v232 = vld [vmem:[#allocation6 + $0x30] sm:$0xff]
    %v233 = vld [vmem:[#allocation6 + $0x38] sm:$0xff]
    %v234 = vld [vmem:[#allocation6 + $0x40] sm:$0xff]
    %v235 = vld [vmem:[#allocation6 + $0x48] sm:$0xff]
    %v236 = vld [vmem:[#allocation6 + $0x50] sm:$0xff]
    %v237 = vld [vmem:[#allocation6 + $0x58] sm:$0xff]
    %v238 = vld [vmem:[#allocation6 + $0x60] sm:$0xff]
    %v239 = vld [vmem:[#allocation6 + $0x68] sm:$0xff]
    %v240 = vld [vmem:[#allocation6 + $0x70] sm:$0xff]
    %v241 = vld [vmem:[#allocation6 + $0x78] sm:$0xff]
    %s242 = scalar_lea.vmem [#allocation6], 128
    %v243 = vld [vmem:[%s242] sm:$0xff]
    %v244 = vld [vmem:[%s242 + $0x8] sm:$0xff]
    %v245 = vld [vmem:[%s242 + $0x10] sm:$0xff]
    %v246 = vld [vmem:[%s242 + $0x18] sm:$0xff]
    %v247 = vld [vmem:[%s242 + $0x20] sm:$0xff]
    %v248 = vld [vmem:[%s242 + $0x28] sm:$0xff]
    %v249 = vld [vmem:[%s242 + $0x30] sm:$0xff]
    %v250 = vld [vmem:[%s242 + $0x38] sm:$0xff]
    %v251 = vld [vmem:[%s242 + $0x40] sm:$0xff]
    %v252 = vld [vmem:[%s242 + $0x48] sm:$0xff]
    %v253 = vld [vmem:[%s242 + $0x50] sm:$0xff]
    %v254 = vld [vmem:[%s242 + $0x58] sm:$0xff]
    %v255 = vld [vmem:[%s242 + $0x60] sm:$0xff]
    %v256 = vld [vmem:[%s242 + $0x68] sm:$0xff]
    %v257 = vld [vmem:[%s242 + $0x70] sm:$0xff]
    %v258 = vld [vmem:[%s242 + $0x78] sm:$0xff]
    %259 = vmatprep.subr.mxu0 0.0
    %260 = vmatpush1.msra.mxu0 %v258
    %261 = vmatprep.subr.mxu0 0.0
    %262 = vmatpush1.msra.mxu0 %v257
    %263 = vmatprep.subr.mxu0 0.0
    %264 = vmatpush1.msra.mxu0 %v256
    %265 = vmatprep.subr.mxu0 0.0
    %266 = vmatpush1.msra.mxu0 %v255
    %267 = vmatprep.subr.mxu0 0.0
    %268 = vmatpush1.msra.mxu0 %v254
    %269 = vmatprep.subr.mxu0 0.0
    %270 = vmatpush1.msra.mxu0 %v253
    %271 = vmatprep.subr.mxu0 0.0
    %272 = vmatpush1.msra.mxu0 %v252
    %273 = vmatprep.subr.mxu0 0.0
    %274 = vmatpush1.msra.mxu0 %v251
    %275 = vmatprep.subr.mxu0 0.0
    %276 = vmatpush1.msra.mxu0 %v250
    %277 = vmatprep.subr.mxu0 0.0
    %278 = vmatpush1.msra.mxu0 %v249
    %279 = vmatprep.subr.mxu0 0.0
    %280 = vmatpush1.msra.mxu0 %v248
    %281 = vmatprep.subr.mxu0 0.0
    %282 = vmatpush1.msra.mxu0 %v247
    %283 = vmatprep.subr.mxu0 0.0
    %284 = vmatpush1.msra.mxu0 %v246
    %285 = vmatprep.subr.mxu0 0.0
    %286 = vmatpush1.msra.mxu0 %v245
    %287 = vmatprep.subr.mxu0 0.0
    %288 = vmatpush1.msra.mxu0 %v244
    %289 = vmatprep.subr.mxu0 0.0
    %290 = vmatpush1.msra.mxu0 %v243
    %291 = vmatprep.subr.mxu0 0.0
    %292 = vmatpush2.msra.mxu0 0.0
    %293 = vmatprep.subr.mxu0 0.0
    %294 = vmatpush2.msra.mxu0 0.0
    %295 = vmatprep.subr.mxu0 0.0
    %296 = vmatpush2.msra.mxu0 0.0
    %297 = vmatprep.subr.mxu0 0.0
    %298 = vmatpush2.msra.mxu0 0.0
    %299 = vmatprep.subr.mxu0 0.0
    %300 = vmatpush2.msra.mxu0 0.0
    %301 = vmatprep.subr.mxu0 0.0
    %302 = vmatpush2.msra.mxu0 0.0
    %303 = vmatprep.subr.mxu0 0.0
    %304 = vmatpush2.msra.mxu0 0.0
    %305 = vmatprep.subr.mxu0 0.0
    %306 = vmatpush2.msra.mxu0 0.0
    %307 = vmatprep.subr.mxu0 0.0
    %308 = vmatpush2.msra.mxu0 0.0
    %309 = vmatprep.subr.mxu0 0.0
    %310 = vmatpush2.msra.mxu0 0.0
    %311 = vmatprep.subr.mxu0 0.0
    %312 = vmatpush2.msra.mxu0 0.0
    %313 = vmatprep.subr.mxu0 0.0
    %314 = vmatpush2.msra.mxu0 0.0
    %315 = vmatprep.subr.mxu0 0.0
    %316 = vmatpush2.msra.mxu0 0.0
    %317 = vmatprep.subr.mxu0 0.0
    %318 = vmatpush2.msra.mxu0 0.0
    %319 = vmatprep.subr.mxu0 0.0
    %320 = vmatpush2.msra.mxu0 0.0
    %321 = vmatprep.subr.mxu0 0.0
    %322 = vmatpush2.msra.mxu0 0.0
    %323 = vmatprep.mubr.f32.mxu0 0.0
    %324 = vmatmul.mubr.f32.gmra.mxu0 %v48
    %v325 = vpop.f32.mrf.mxu0
    %v326 = vadd.f32 0.0, %v325
    %v327 = vpop.f32.mrf.mxu0
    %328 = vdwg.mxu0
    %329 = vmatprep.subr.mxu0 0.0
    %330 = vmatpush1.msra.mxu0 %v241
    %331 = vmatprep.subr.mxu0 0.0
    %332 = vmatpush1.msra.mxu0 %v240
    %333 = vmatprep.subr.mxu0 0.0
    %334 = vmatpush1.msra.mxu0 %v239
    %335 = vmatprep.subr.mxu0 0.0
    %336 = vmatpush1.msra.mxu0 %v238
    %337 = vmatprep.subr.mxu0 0.0
    %338 = vmatpush1.msra.mxu0 %v237
    %339 = vmatprep.subr.mxu0 0.0
    %340 = vmatpush1.msra.mxu0 %v236
    %341 = vmatprep.subr.mxu0 0.0
    %342 = vmatpush1.msra.mxu0 %v235
    %343 = vmatprep.subr.mxu0 0.0
    %344 = vmatpush1.msra.mxu0 %v234
    %345 = vmatprep.subr.mxu0 0.0
    %346 = vmatpush1.msra.mxu0 %v233
    %347 = vmatprep.subr.mxu0 0.0
    %348 = vmatpush1.msra.mxu0 %v232
    %349 = vmatprep.subr.mxu0 0.0
    %350 = vmatpush1.msra.mxu0 %v231
    %351 = vmatprep.subr.mxu0 0.0
    %352 = vmatpush1.msra.mxu0 %v230
    %353 = vmatprep.subr.mxu0 0.0
    %354 = vmatpush1.msra.mxu0 %v229
    %355 = vmatprep.subr.mxu0 0.0
    %356 = vmatpush1.msra.mxu0 %v228
    %357 = vmatprep.subr.mxu0 0.0
    %358 = vmatpush1.msra.mxu0 %v227
    %359 = vmatprep.subr.mxu0 0.0
    %360 = vmatpush1.msra.mxu0 %v226
    %361 = vmatprep.subr.mxu0 0.0
    %362 = vmatpush2.msra.mxu0 0.0
    %363 = vmatprep.subr.mxu0 0.0
    %364 = vmatpush2.msra.mxu0 0.0
    %365 = vmatprep.subr.mxu0 0.0
    %366 = vmatpush2.msra.mxu0 0.0
    %367 = vmatprep.subr.mxu0 0.0
    %368 = vmatpush2.msra.mxu0 0.0
    %369 = vmatprep.subr.mxu0 0.0
    %370 = vmatpush2.msra.mxu0 0.0
    %371 = vmatprep.subr.mxu0 0.0
    %372 = vmatpush2.msra.mxu0 0.0
    %373 = vmatprep.subr.mxu0 0.0
    %374 = vmatpush2.msra.mxu0 0.0
    %375 = vmatprep.subr.mxu0 0.0
    %376 = vmatpush2.msra.mxu0 0.0
    %377 = vmatprep.subr.mxu0 0.0
    %378 = vmatpush2.msra.mxu0 0.0
    %379 = vmatprep.subr.mxu0 0.0
    %380 = vmatpush2.msra.mxu0 0.0
    %381 = vmatprep.subr.mxu0 0.0
    %382 = vmatpush2.msra.mxu0 0.0
    %383 = vmatprep.subr.mxu0 0.0
    %384 = vmatpush2.msra.mxu0 0.0
    %385 = vmatprep.subr.mxu0 0.0
    %386 = vmatpush2.msra.mxu0 0.0
    %387 = vmatprep.subr.mxu0 0.0
    %388 = vmatpush2.msra.mxu0 0.0
    %389 = vmatprep.subr.mxu0 0.0
    %390 = vmatpush2.msra.mxu0 0.0
    %391 = vmatprep.subr.mxu0 0.0
    %392 = vmatpush2.msra.mxu0 0.0
    %393 = vmatprep.mubr.f32.mxu0 0.0
    %394 = vmatmul.mubr.f32.gmra.mxu0 %v141
    %v395 = vpop.f32.mrf.mxu0
    %v396 = vadd.f32 %v326, %v395
    %v397 = vpop.f32.mrf.mxu0
    %398 = vdwg.mxu0
    %s399 = scalar_lea.vmem [#allocation6], 256
    %v400 = vld [vmem:[%s399] sm:$0xff]
    %v401 = vld [vmem:[%s399 + $0x8] sm:$0xff]
    %v402 = vld [vmem:[%s399 + $0x10] sm:$0xff]
    %v403 = vld [vmem:[%s399 + $0x18] sm:$0xff]
    %v404 = vld [vmem:[%s399 + $0x20] sm:$0xff]
    %v405 = vld [vmem:[%s399 + $0x28] sm:$0xff]
    %v406 = vld [vmem:[%s399 + $0x30] sm:$0xff]
    %v407 = vld [vmem:[%s399 + $0x38] sm:$0xff]
    %v408 = vld [vmem:[%s399 + $0x40] sm:$0xff]
    %v409 = vld [vmem:[%s399 + $0x48] sm:$0xff]
    %v410 = vld [vmem:[%s399 + $0x50] sm:$0xff]
    %v411 = vld [vmem:[%s399 + $0x58] sm:$0xff]
    %v412 = vld [vmem:[%s399 + $0x60] sm:$0xff]
    %v413 = vld [vmem:[%s399 + $0x68] sm:$0xff]
    %v414 = vld [vmem:[%s399 + $0x70] sm:$0xff]
    %v415 = vld [vmem:[%s399 + $0x78] sm:$0xff]
    %416 = vmatprep.subr.mxu0 0.0
    %417 = vmatpush1.msra.mxu0 %v415
    %418 = vmatprep.subr.mxu0 0.0
    %419 = vmatpush1.msra.mxu0 %v414
    %420 = vmatprep.subr.mxu0 0.0
    %421 = vmatpush1.msra.mxu0 %v413
    %422 = vmatprep.subr.mxu0 0.0
    %423 = vmatpush1.msra.mxu0 %v412
    %424 = vmatprep.subr.mxu0 0.0
    %425 = vmatpush1.msra.mxu0 %v411
    %426 = vmatprep.subr.mxu0 0.0
    %427 = vmatpush1.msra.mxu0 %v410
    %428 = vmatprep.subr.mxu0 0.0
    %429 = vmatpush1.msra.mxu0 %v409
    %430 = vmatprep.subr.mxu0 0.0
    %431 = vmatpush1.msra.mxu0 %v408
    %432 = vmatprep.subr.mxu0 0.0
    %433 = vmatpush1.msra.mxu0 %v407
    %434 = vmatprep.subr.mxu0 0.0
    %435 = vmatpush1.msra.mxu0 %v406
    %436 = vmatprep.subr.mxu0 0.0
    %437 = vmatpush1.msra.mxu0 %v405
    %438 = vmatprep.subr.mxu0 0.0
    %439 = vmatpush1.msra.mxu0 %v404
    %440 = vmatprep.subr.mxu0 0.0
    %441 = vmatpush1.msra.mxu0 %v403
    %442 = vmatprep.subr.mxu0 0.0
    %443 = vmatpush1.msra.mxu0 %v402
    %444 = vmatprep.subr.mxu0 0.0
    %445 = vmatpush1.msra.mxu0 %v401
    %446 = vmatprep.subr.mxu0 0.0
    %447 = vmatpush1.msra.mxu0 %v400
    %448 = vmatprep.subr.mxu0 0.0
    %449 = vmatpush2.msra.mxu0 0.0
    %450 = vmatprep.subr.mxu0 0.0
    %451 = vmatpush2.msra.mxu0 0.0
    %452 = vmatprep.subr.mxu0 0.0
    %453 = vmatpush2.msra.mxu0 0.0
    %454 = vmatprep.subr.mxu0 0.0
    %455 = vmatpush2.msra.mxu0 0.0
    %456 = vmatprep.subr.mxu0 0.0
    %457 = vmatpush2.msra.mxu0 0.0
    %458 = vmatprep.subr.mxu0 0.0
    %459 = vmatpush2.msra.mxu0 0.0
    %460 = vmatprep.subr.mxu0 0.0
    %461 = vmatpush2.msra.mxu0 0.0
    %462 = vmatprep.subr.mxu0 0.0
    %463 = vmatpush2.msra.mxu0 0.0
    %464 = vmatprep.subr.mxu0 0.0
    %465 = vmatpush2.msra.mxu0 0.0
    %466 = vmatprep.subr.mxu0 0.0
    %467 = vmatpush2.msra.mxu0 0.0
    %468 = vmatprep.subr.mxu0 0.0
    %469 = vmatpush2.msra.mxu0 0.0
    %470 = vmatprep.subr.mxu0 0.0
    %471 = vmatpush2.msra.mxu0 0.0
    %472 = vmatprep.subr.mxu0 0.0
    %473 = vmatpush2.msra.mxu0 0.0
    %474 = vmatprep.subr.mxu0 0.0
    %475 = vmatpush2.msra.mxu0 0.0
    %476 = vmatprep.subr.mxu0 0.0
    %477 = vmatpush2.msra.mxu0 0.0
    %478 = vmatprep.subr.mxu0 0.0
    %479 = vmatpush2.msra.mxu0 0.0
    %480 = vmatprep.mubr.f32.mxu0 0.0
    %481 = vmatmul.mubr.f32.gmra.mxu0 %v223
    %v482 = vpop.f32.mrf.mxu0
    %v483 = vadd.f32 0.0, %v482
    %v484 = vpop.f32.mrf.mxu0
    %485 = vdwg.mxu0
    %v486 = vadd.f32 %v396, %v483
    %s487 = sld [smem:[#allocation2]]
    %v488 = vstv %s487
    %v489 = vadd.f32 %v486, %v488
    %490 = vst [vmem:[#allocation8] sm:$0xff] %v489
    // Predicated region
    $region30: #{tpu_custom_call.1} parent=1 // pred_check
      _
    $region31: #{tpu_custom_call.1} parent=1 // pred_check_branch
      %492 = sbr.rel (0) target = $region33
    $region32: #{tpu_custom_call.1} parent=1 // pred_region
      %s494 = ssub.s32 128, 128
      %495 = vsyncadd [#allocation5], %s494
      %s497 = sshll.u32 [#allocation8], 4
      %s498 = int_to_ptr.vmem [resolvable:$true] %s497
      %500 = dma.vmem_to_hbm [thread:$0]  %s498, 128, %s5, [#allocation5]
    $region33: #{tpu_custom_call.1} parent=1 // pred_fallthru
      _
    // Predicated region
    $region34: #{tpu_custom_call.1} parent=1 // pred_check
      _
    $region35: #{tpu_custom_call.1} parent=1 // pred_check_branch
      %502 = sbr.rel (0) target = $region37
    $region36: #{tpu_custom_call.1} parent=1 // pred_region
      %503 = dma.done [#allocation5], 128
    $region37: #{tpu_custom_call.1} parent=1 // pred_fallthru
      _
    %504 = vsyncpa [#allocation4], 1
    %505 = vsyncpa [#allocation7], 1
    %506 = vsyncpa [#allocation5], 1

</llo_original>
